<compile_context>
chip_gen: v7x
topology: tpu7x:2x2x1
jax: 0.10.0
libtpu: 0.0.40
codegen_flags: <defaults>
</compile_context>

<pallas_src>
import functools

import jax
import jax.numpy as jnp
from jax.experimental import pallas as pl
from jax.experimental.pallas import tpu as pltpu


def _lstm_seq_kernel(x_ref, wih_ref, whh_ref, b_ref, wlin_ref, blin_ref,
                     out_ref, hseq_scr, *, seq_len, batch):
    """Single invocation: full LSTM recurrence + Linear head.

    x_ref:    (T*B, I)   time-major, flattened
    wih_ref:  (I, 4H)    W_ih^T
    whh_ref:  (H, 4H)    W_hh^T
    b_ref:    (1, 4H)    b_ih + b_hh
    wlin_ref: (H, O)     W_linear^T
    blin_ref: (1, O)
    out_ref:  (T*B, O)
    hseq_scr: (T*B, H)   VMEM scratch holding every h_t
    """
    T, B = seq_len, batch
    H = whh_ref.shape[0]

    # (1) Input projection hoisted out of the recurrence:
    #     one well-shaped MXU matmul instead of T tiny ones.
    xw = (jnp.dot(x_ref[...], wih_ref[...], preferred_element_type=jnp.float32)
          + b_ref[...])                                    # (T*B, 4H)

    whh = whh_ref[...]                                     # load weights once

    h = jnp.zeros((B, H), jnp.float32)
    c = jnp.zeros((B, H), jnp.float32)

    # (2) Fully unrolled recurrence (T is static): straight-line code for the
    #     scheduler, purely static indexing, no per-step grid overhead.
    for t in range(T):
        gates = xw[t * B:(t + 1) * B, :] + jnp.dot(
            h, whh, preferred_element_type=jnp.float32)    # (B, 4H)

        # Transcendentals on the whole (B, 4H) tile, slice afterwards
        # (two big EUP pushes instead of four narrow sliced ones).
        sig = jax.nn.sigmoid(gates)
        tah = jnp.tanh(gates)
        i_g = sig[:, 0 * H:1 * H]
        f_g = sig[:, 1 * H:2 * H]
        g_g = tah[:, 2 * H:3 * H]
        o_g = sig[:, 3 * H:4 * H]

        c = f_g * c + i_g * g_g
        h = o_g * jnp.tanh(c)

        hseq_scr[t * B:(t + 1) * B, :] = h                 # stash h_t

    # (3) Output head: one (T*B, H) x (H, O) matmul and a single batched store.
    out_ref[...] = (jnp.dot(hseq_scr[...], wlin_ref[...],
                            preferred_element_type=jnp.float32)
                    + blin_ref[...])


def rnn_forward_pallas(x_bti, params):
    """x_bti: (B, T, I) float32  ->  (B, T, O) float32."""
    B, T, I = x_bti.shape
    wih_t = params["wih_t"]     # (I, 4H)
    whh_t = params["whh_t"]     # (H, 4H)
    b = params["b"]             # (1, 4H)  (b_ih + b_hh)
    wlin_t = params["wlin_t"]   # (H, O)
    blin = params["blin"]       # (1, O)
    H = whh_t.shape[0]
    O = wlin_t.shape[1]

    # Time-major, flattened to 2-D so every operand is a clean full-array block.
    x2d = jnp.transpose(x_bti, (1, 0, 2)).reshape(T * B, I)

    kernel = functools.partial(_lstm_seq_kernel, seq_len=T, batch=B)

    out2d = pl.pallas_call(
        kernel,
        out_shape=jax.ShapeDtypeStruct((T * B, O), jnp.float32),
        grid_spec=pltpu.PrefetchScalarGridSpec(
            num_scalar_prefetch=0,
            grid=(1,),                                   # single invocation
            in_specs=[
                pl.BlockSpec((T * B, I), lambda i: (0, 0)),      # x (time-major)
                pl.BlockSpec((I, 4 * H), lambda i: (0, 0)),      # W_ih^T
                pl.BlockSpec((H, 4 * H), lambda i: (0, 0)),      # W_hh^T
                pl.BlockSpec((1, 4 * H), lambda i: (0, 0)),      # bias (combined)
                pl.BlockSpec((H, O), lambda i: (0, 0)),          # W_linear^T
                pl.BlockSpec((1, O), lambda i: (0, 0)),          # b_linear
            ],
            out_specs=pl.BlockSpec((T * B, O), lambda i: (0, 0)),
            scratch_shapes=[
                pltpu.VMEM((T * B, H), jnp.float32),     # full h-sequence slab
            ],
        ),
        compiler_params=pltpu.CompilerParams(
            dimension_semantics=("arbitrary",),
        ),
    )(x2d, wih_t, whh_t, b, wlin_t, blin)

    return jnp.transpose(out2d.reshape(T, B, O), (1, 0, 2))   # back to (B, T, O)


def _reference_forward(x_bti, params):
    """Pure-JAX reference (mirrors the PyTorch forward) for verification."""
    B, T, I = x_bti.shape
    H = params["whh_t"].shape[0]
    h = jnp.zeros((B, H), jnp.float32)
    c = jnp.zeros((B, H), jnp.float32)
    outs = []
    for t in range(T):
        x_t = x_bti[:, t, :]
        gates = x_t @ params["wih_t"] + h @ params["whh_t"] + params["b"]
        i_g = jax.nn.sigmoid(gates[:, 0 * H:1 * H])
        f_g = jax.nn.sigmoid(gates[:, 1 * H:2 * H])
        g_g = jnp.tanh(gates[:, 2 * H:3 * H])
        o_g = jax.nn.sigmoid(gates[:, 3 * H:4 * H])
        c = f_g * c + i_g * g_g
        h = o_g * jnp.tanh(c)
        outs.append(h @ params["wlin_t"] + params["blin"])
    return jnp.stack(outs, axis=1)


def init_params(key, input_size, hidden_size, output_size):
    """Deterministic init (uniform(-1/sqrt(H), 1/sqrt(H)), PyTorch-style)."""
    ks = jax.random.split(key, 5)
    bound = 1.0 / jnp.sqrt(jnp.float32(hidden_size))
    u = lambda k, shape: jax.random.uniform(k, shape, jnp.float32, -bound, bound)
    return {
        "wih_t": u(ks[0], (input_size, 4 * hidden_size)),
        "whh_t": u(ks[1], (hidden_size, 4 * hidden_size)),
        "b": u(ks[2], (1, 4 * hidden_size)),      # b_ih + b_hh combined
        "wlin_t": u(ks[3], (hidden_size, output_size)),
        "blin": u(ks[4], (1, output_size)),
    }


if __name__ == "__main__":
    B, T = 2, 8
    input_size, hidden_size, output_size = 1, 32, 1

    key = jax.random.PRNGKey(0)
    k_x, k_p = jax.random.split(key)
    x = jax.random.normal(k_x, (B, T, input_size), jnp.float32)
    params = init_params(k_p, input_size, hidden_size, output_size)

    out = rnn_forward_pallas(x, params)
    out = jax.block_until_ready(out)

    ref = _reference_forward(x, params)
    assert out.shape == (B, T, output_size), out.shape
    assert jnp.allclose(out, ref, atol=1e-5, rtol=1e-4), "mismatch vs reference"

    print("KERNEL_OK")
</pallas_src>

<mosaic_0001>
module attributes {stable_mosaic.version = 11 : i64} {
  func.func @_lstm_seq_kernel(%arg0: i32, %arg1: memref<16x1xf32, #tpu.memory_space<vmem>>, %arg2: memref<1x128xf32, #tpu.memory_space<vmem>>, %arg3: memref<32x128xf32, #tpu.memory_space<vmem>>, %arg4: memref<1x128xf32, #tpu.memory_space<vmem>>, %arg5: memref<32x1xf32, #tpu.memory_space<vmem>>, %arg6: memref<1x1xf32, #tpu.memory_space<vmem>>, %arg7: memref<16x1xf32, #tpu.memory_space<vmem>>, %arg8: memref<16x32xf32, #tpu.memory_space<vmem>>) attributes {dimension_semantics = [#tpu.dimension_semantics<arbitrary>], iteration_bounds = array<i64: 1>, scalar_prefetch = 0 : i64, scratch_operands = 1 : i64, tpu.core_type = #tpu.core_type<tc>, window_params = [{pipeline_mode = #tpu.pipeline_mode<synchronous>, transform_indices = @transform_0, window_bounds = array<i64: 16, 1>}, {pipeline_mode = #tpu.pipeline_mode<synchronous>, transform_indices = @transform_1, window_bounds = array<i64: 1, 128>}, {pipeline_mode = #tpu.pipeline_mode<synchronous>, transform_indices = @transform_2, window_bounds = array<i64: 32, 128>}, {pipeline_mode = #tpu.pipeline_mode<synchronous>, transform_indices = @transform_3, window_bounds = array<i64: 1, 128>}, {pipeline_mode = #tpu.pipeline_mode<synchronous>, transform_indices = @transform_4, window_bounds = array<i64: 32, 1>}, {pipeline_mode = #tpu.pipeline_mode<synchronous>, transform_indices = @transform_5, window_bounds = array<i64: 1, 1>}, {pipeline_mode = #tpu.pipeline_mode<synchronous>, transform_indices = @transform_6, window_bounds = array<i64: 16, 1>}]} {
    %c0 = arith.constant 0 : index
    %c0_0 = arith.constant 0 : index
    %0 = vector.load %arg1[%c0, %c0_0] : memref<16x1xf32, #tpu.memory_space<vmem>>, vector<16x1xf32>
    %c0_1 = arith.constant 0 : index
    %c0_2 = arith.constant 0 : index
    %1 = vector.load %arg2[%c0_1, %c0_2] : memref<1x128xf32, #tpu.memory_space<vmem>>, vector<1x128xf32>
    %cst = arith.constant dense<0.000000e+00> : vector<16x128xf32>
    %2 = tpu.matmul %0, %1, %cst {dimension_numbers = #tpu.dot_dimension_numbers<[1], [0], [0], [1], [0, 0, 1, 1], [], []>} : vector<16x1xf32>, vector<1x128xf32>, vector<16x128xf32> -> vector<16x128xf32>
    %c0_3 = arith.constant 0 : index
    %c0_4 = arith.constant 0 : index
    %3 = vector.load %arg4[%c0_3, %c0_4] : memref<1x128xf32, #tpu.memory_space<vmem>>, vector<1x128xf32>
    %4 = vector.broadcast %3 : vector<1x128xf32> to vector<16x128xf32>
    %5 = arith.addf %2, %4 : vector<16x128xf32>
    %c0_5 = arith.constant 0 : index
    %c0_6 = arith.constant 0 : index
    %6 = vector.load %arg3[%c0_5, %c0_6] : memref<32x128xf32, #tpu.memory_space<vmem>>, vector<32x128xf32>
    %cst_7 = arith.constant 0.000000e+00 : f32
    %7 = vector.broadcast %cst_7 : f32 to vector<2x32xf32>
    %cst_8 = arith.constant 0.000000e+00 : f32
    %8 = vector.broadcast %cst_8 : f32 to vector<2x32xf32>
    %9 = vector.extract_strided_slice %5 {offsets = [0, 0], sizes = [2, 128], strides = [1, 1]} : vector<16x128xf32> to vector<2x128xf32>
    %cst_9 = arith.constant dense<0.000000e+00> : vector<2x128xf32>
    %10 = tpu.matmul %7, %6, %cst_9 {dimension_numbers = #tpu.dot_dimension_numbers<[1], [0], [0], [1], [0, 0, 1, 1], [], []>} : vector<2x32xf32>, vector<32x128xf32>, vector<2x128xf32> -> vector<2x128xf32>
    %11 = arith.addf %9, %10 : vector<2x128xf32>
    %12 = arith.negf %11 : vector<2x128xf32>
    %13 = math.exp %12 : vector<2x128xf32>
    %cst_10 = arith.constant 1.000000e+00 : f32
    %14 = vector.broadcast %cst_10 : f32 to vector<2x128xf32>
    %15 = arith.addf %14, %13 : vector<2x128xf32>
    %16 = arith.divf %14, %15 : vector<2x128xf32>
    %17 = math.tanh %11 : vector<2x128xf32>
    %18 = vector.extract_strided_slice %16 {offsets = [0, 0], sizes = [2, 32], strides = [1, 1]} : vector<2x128xf32> to vector<2x32xf32>
    %19 = vector.extract_strided_slice %16 {offsets = [0, 32], sizes = [2, 32], strides = [1, 1]} : vector<2x128xf32> to vector<2x32xf32>
    %20 = vector.extract_strided_slice %17 {offsets = [0, 64], sizes = [2, 32], strides = [1, 1]} : vector<2x128xf32> to vector<2x32xf32>
    %21 = vector.extract_strided_slice %16 {offsets = [0, 96], sizes = [2, 32], strides = [1, 1]} : vector<2x128xf32> to vector<2x32xf32>
    %22 = arith.mulf %19, %8 : vector<2x32xf32>
    %23 = arith.mulf %18, %20 : vector<2x32xf32>
    %24 = arith.addf %22, %23 : vector<2x32xf32>
    %25 = math.tanh %24 : vector<2x32xf32>
    %26 = arith.mulf %21, %25 : vector<2x32xf32>
    %c0_11 = arith.constant 0 : index
    %c0_12 = arith.constant 0 : index
    %27 = vector.load %arg8[%c0_11, %c0_12] : memref<16x32xf32, #tpu.memory_space<vmem>>, vector<2x32xf32>
    tpu.vector_store %arg8[%c0_11, %c0_12], %26 {strides = array<i32>} : memref<16x32xf32, #tpu.memory_space<vmem>>, vector<2x32xf32>,
    %28 = vector.extract_strided_slice %5 {offsets = [2, 0], sizes = [2, 128], strides = [1, 1]} : vector<16x128xf32> to vector<2x128xf32>
    %cst_13 = arith.constant dense<0.000000e+00> : vector<2x128xf32>
    %29 = tpu.matmul %26, %6, %cst_13 {dimension_numbers = #tpu.dot_dimension_numbers<[1], [0], [0], [1], [0, 0, 1, 1], [], []>} : vector<2x32xf32>, vector<32x128xf32>, vector<2x128xf32> -> vector<2x128xf32>
    %30 = arith.addf %28, %29 : vector<2x128xf32>
    %31 = arith.negf %30 : vector<2x128xf32>
    %32 = math.exp %31 : vector<2x128xf32>
    %cst_14 = arith.constant 1.000000e+00 : f32
    %33 = vector.broadcast %cst_14 : f32 to vector<2x128xf32>
    %34 = arith.addf %33, %32 : vector<2x128xf32>
    %35 = arith.divf %33, %34 : vector<2x128xf32>
    %36 = math.tanh %30 : vector<2x128xf32>
    %37 = vector.extract_strided_slice %35 {offsets = [0, 0], sizes = [2, 32], strides = [1, 1]} : vector<2x128xf32> to vector<2x32xf32>
    %38 = vector.extract_strided_slice %35 {offsets = [0, 32], sizes = [2, 32], strides = [1, 1]} : vector<2x128xf32> to vector<2x32xf32>
    %39 = vector.extract_strided_slice %36 {offsets = [0, 64], sizes = [2, 32], strides = [1, 1]} : vector<2x128xf32> to vector<2x32xf32>
    %40 = vector.extract_strided_slice %35 {offsets = [0, 96], sizes = [2, 32], strides = [1, 1]} : vector<2x128xf32> to vector<2x32xf32>
    %41 = arith.mulf %38, %24 : vector<2x32xf32>
    %42 = arith.mulf %37, %39 : vector<2x32xf32>
    %43 = arith.addf %41, %42 : vector<2x32xf32>
    %44 = math.tanh %43 : vector<2x32xf32>
    %45 = arith.mulf %40, %44 : vector<2x32xf32>
    %c2 = arith.constant 2 : index
    %c0_15 = arith.constant 0 : index
    %46 = vector.load %arg8[%c2, %c0_15] : memref<16x32xf32, #tpu.memory_space<vmem>>, vector<2x32xf32>
    tpu.vector_store %arg8[%c2, %c0_15], %45 {strides = array<i32>} : memref<16x32xf32, #tpu.memory_space<vmem>>, vector<2x32xf32>,
    %47 = vector.extract_strided_slice %5 {offsets = [4, 0], sizes = [2, 128], strides = [1, 1]} : vector<16x128xf32> to vector<2x128xf32>
    %cst_16 = arith.constant dense<0.000000e+00> : vector<2x128xf32>
    %48 = tpu.matmul %45, %6, %cst_16 {dimension_numbers = #tpu.dot_dimension_numbers<[1], [0], [0], [1], [0, 0, 1, 1], [], []>} : vector<2x32xf32>, vector<32x128xf32>, vector<2x128xf32> -> vector<2x128xf32>
    %49 = arith.addf %47, %48 : vector<2x128xf32>
    %50 = arith.negf %49 : vector<2x128xf32>
    %51 = math.exp %50 : vector<2x128xf32>
    %cst_17 = arith.constant 1.000000e+00 : f32
    %52 = vector.broadcast %cst_17 : f32 to vector<2x128xf32>
    %53 = arith.addf %52, %51 : vector<2x128xf32>
    %54 = arith.divf %52, %53 : vector<2x128xf32>
    %55 = math.tanh %49 : vector<2x128xf32>
    %56 = vector.extract_strided_slice %54 {offsets = [0, 0], sizes = [2, 32], strides = [1, 1]} : vector<2x128xf32> to vector<2x32xf32>
    %57 = vector.extract_strided_slice %54 {offsets = [0, 32], sizes = [2, 32], strides = [1, 1]} : vector<2x128xf32> to vector<2x32xf32>
    %58 = vector.extract_strided_slice %55 {offsets = [0, 64], sizes = [2, 32], strides = [1, 1]} : vector<2x128xf32> to vector<2x32xf32>
    %59 = vector.extract_strided_slice %54 {offsets = [0, 96], sizes = [2, 32], strides = [1, 1]} : vector<2x128xf32> to vector<2x32xf32>
    %60 = arith.mulf %57, %43 : vector<2x32xf32>
    %61 = arith.mulf %56, %58 : vector<2x32xf32>
    %62 = arith.addf %60, %61 : vector<2x32xf32>
    %63 = math.tanh %62 : vector<2x32xf32>
    %64 = arith.mulf %59, %63 : vector<2x32xf32>
    %c4 = arith.constant 4 : index
    %c0_18 = arith.constant 0 : index
    %65 = vector.load %arg8[%c4, %c0_18] : memref<16x32xf32, #tpu.memory_space<vmem>>, vector<2x32xf32>
    tpu.vector_store %arg8[%c4, %c0_18], %64 {strides = array<i32>} : memref<16x32xf32, #tpu.memory_space<vmem>>, vector<2x32xf32>,
    %66 = vector.extract_strided_slice %5 {offsets = [6, 0], sizes = [2, 128], strides = [1, 1]} : vector<16x128xf32> to vector<2x128xf32>
    %cst_19 = arith.constant dense<0.000000e+00> : vector<2x128xf32>
    %67 = tpu.matmul %64, %6, %cst_19 {dimension_numbers = #tpu.dot_dimension_numbers<[1], [0], [0], [1], [0, 0, 1, 1], [], []>} : vector<2x32xf32>, vector<32x128xf32>, vector<2x128xf32> -> vector<2x128xf32>
    %68 = arith.addf %66, %67 : vector<2x128xf32>
    %69 = arith.negf %68 : vector<2x128xf32>
    %70 = math.exp %69 : vector<2x128xf32>
    %cst_20 = arith.constant 1.000000e+00 : f32
    %71 = vector.broadcast %cst_20 : f32 to vector<2x128xf32>
    %72 = arith.addf %71, %70 : vector<2x128xf32>
    %73 = arith.divf %71, %72 : vector<2x128xf32>
    %74 = math.tanh %68 : vector<2x128xf32>
    %75 = vector.extract_strided_slice %73 {offsets = [0, 0], sizes = [2, 32], strides = [1, 1]} : vector<2x128xf32> to vector<2x32xf32>
    %76 = vector.extract_strided_slice %73 {offsets = [0, 32], sizes = [2, 32], strides = [1, 1]} : vector<2x128xf32> to vector<2x32xf32>
    %77 = vector.extract_strided_slice %74 {offsets = [0, 64], sizes = [2, 32], strides = [1, 1]} : vector<2x128xf32> to vector<2x32xf32>
    %78 = vector.extract_strided_slice %73 {offsets = [0, 96], sizes = [2, 32], strides = [1, 1]} : vector<2x128xf32> to vector<2x32xf32>
    %79 = arith.mulf %76, %62 : vector<2x32xf32>
    %80 = arith.mulf %75, %77 : vector<2x32xf32>
    %81 = arith.addf %79, %80 : vector<2x32xf32>
    %82 = math.tanh %81 : vector<2x32xf32>
    %83 = arith.mulf %78, %82 : vector<2x32xf32>
    %c6 = arith.constant 6 : index
    %c0_21 = arith.constant 0 : index
    %84 = vector.load %arg8[%c6, %c0_21] : memref<16x32xf32, #tpu.memory_space<vmem>>, vector<2x32xf32>
    tpu.vector_store %arg8[%c6, %c0_21], %83 {strides = array<i32>} : memref<16x32xf32, #tpu.memory_space<vmem>>, vector<2x32xf32>,
    %85 = vector.extract_strided_slice %5 {offsets = [8, 0], sizes = [2, 128], strides = [1, 1]} : vector<16x128xf32> to vector<2x128xf32>
    %cst_22 = arith.constant dense<0.000000e+00> : vector<2x128xf32>
    %86 = tpu.matmul %83, %6, %cst_22 {dimension_numbers = #tpu.dot_dimension_numbers<[1], [0], [0], [1], [0, 0, 1, 1], [], []>} : vector<2x32xf32>, vector<32x128xf32>, vector<2x128xf32> -> vector<2x128xf32>
    %87 = arith.addf %85, %86 : vector<2x128xf32>
    %88 = arith.negf %87 : vector<2x128xf32>
    %89 = math.exp %88 : vector<2x128xf32>
    %cst_23 = arith.constant 1.000000e+00 : f32
    %90 = vector.broadcast %cst_23 : f32 to vector<2x128xf32>
    %91 = arith.addf %90, %89 : vector<2x128xf32>
    %92 = arith.divf %90, %91 : vector<2x128xf32>
    %93 = math.tanh %87 : vector<2x128xf32>
    %94 = vector.extract_strided_slice %92 {offsets = [0, 0], sizes = [2, 32], strides = [1, 1]} : vector<2x128xf32> to vector<2x32xf32>
    %95 = vector.extract_strided_slice %92 {offsets = [0, 32], sizes = [2, 32], strides = [1, 1]} : vector<2x128xf32> to vector<2x32xf32>
    %96 = vector.extract_strided_slice %93 {offsets = [0, 64], sizes = [2, 32], strides = [1, 1]} : vector<2x128xf32> to vector<2x32xf32>
    %97 = vector.extract_strided_slice %92 {offsets = [0, 96], sizes = [2, 32], strides = [1, 1]} : vector<2x128xf32> to vector<2x32xf32>
    %98 = arith.mulf %95, %81 : vector<2x32xf32>
    %99 = arith.mulf %94, %96 : vector<2x32xf32>
    %100 = arith.addf %98, %99 : vector<2x32xf32>
    %101 = math.tanh %100 : vector<2x32xf32>
    %102 = arith.mulf %97, %101 : vector<2x32xf32>
    %c8 = arith.constant 8 : index
    %c0_24 = arith.constant 0 : index
    %103 = vector.load %arg8[%c8, %c0_24] : memref<16x32xf32, #tpu.memory_space<vmem>>, vector<2x32xf32>
    tpu.vector_store %arg8[%c8, %c0_24], %102 {strides = array<i32>} : memref<16x32xf32, #tpu.memory_space<vmem>>, vector<2x32xf32>,
    %104 = vector.extract_strided_slice %5 {offsets = [10, 0], sizes = [2, 128], strides = [1, 1]} : vector<16x128xf32> to vector<2x128xf32>
    %cst_25 = arith.constant dense<0.000000e+00> : vector<2x128xf32>
    %105 = tpu.matmul %102, %6, %cst_25 {dimension_numbers = #tpu.dot_dimension_numbers<[1], [0], [0], [1], [0, 0, 1, 1], [], []>} : vector<2x32xf32>, vector<32x128xf32>, vector<2x128xf32> -> vector<2x128xf32>
    %106 = arith.addf %104, %105 : vector<2x128xf32>
    %107 = arith.negf %106 : vector<2x128xf32>
    %108 = math.exp %107 : vector<2x128xf32>
    %cst_26 = arith.constant 1.000000e+00 : f32
    %109 = vector.broadcast %cst_26 : f32 to vector<2x128xf32>
    %110 = arith.addf %109, %108 : vector<2x128xf32>
    %111 = arith.divf %109, %110 : vector<2x128xf32>
    %112 = math.tanh %106 : vector<2x128xf32>
    %113 = vector.extract_strided_slice %111 {offsets = [0, 0], sizes = [2, 32], strides = [1, 1]} : vector<2x128xf32> to vector<2x32xf32>
    %114 = vector.extract_strided_slice %111 {offsets = [0, 32], sizes = [2, 32], strides = [1, 1]} : vector<2x128xf32> to vector<2x32xf32>
    %115 = vector.extract_strided_slice %112 {offsets = [0, 64], sizes = [2, 32], strides = [1, 1]} : vector<2x128xf32> to vector<2x32xf32>
    %116 = vector.extract_strided_slice %111 {offsets = [0, 96], sizes = [2, 32], strides = [1, 1]} : vector<2x128xf32> to vector<2x32xf32>
    %117 = arith.mulf %114, %100 : vector<2x32xf32>
    %118 = arith.mulf %113, %115 : vector<2x32xf32>
    %119 = arith.addf %117, %118 : vector<2x32xf32>
    %120 = math.tanh %119 : vector<2x32xf32>
    %121 = arith.mulf %116, %120 : vector<2x32xf32>
    %c10 = arith.constant 10 : index
    %c0_27 = arith.constant 0 : index
    %122 = vector.load %arg8[%c10, %c0_27] : memref<16x32xf32, #tpu.memory_space<vmem>>, vector<2x32xf32>
    tpu.vector_store %arg8[%c10, %c0_27], %121 {strides = array<i32>} : memref<16x32xf32, #tpu.memory_space<vmem>>, vector<2x32xf32>,
    %123 = vector.extract_strided_slice %5 {offsets = [12, 0], sizes = [2, 128], strides = [1, 1]} : vector<16x128xf32> to vector<2x128xf32>
    %cst_28 = arith.constant dense<0.000000e+00> : vector<2x128xf32>
    %124 = tpu.matmul %121, %6, %cst_28 {dimension_numbers = #tpu.dot_dimension_numbers<[1], [0], [0], [1], [0, 0, 1, 1], [], []>} : vector<2x32xf32>, vector<32x128xf32>, vector<2x128xf32> -> vector<2x128xf32>
    %125 = arith.addf %123, %124 : vector<2x128xf32>
    %126 = arith.negf %125 : vector<2x128xf32>
    %127 = math.exp %126 : vector<2x128xf32>
    %cst_29 = arith.constant 1.000000e+00 : f32
    %128 = vector.broadcast %cst_29 : f32 to vector<2x128xf32>
    %129 = arith.addf %128, %127 : vector<2x128xf32>
    %130 = arith.divf %128, %129 : vector<2x128xf32>
    %131 = math.tanh %125 : vector<2x128xf32>
    %132 = vector.extract_strided_slice %130 {offsets = [0, 0], sizes = [2, 32], strides = [1, 1]} : vector<2x128xf32> to vector<2x32xf32>
    %133 = vector.extract_strided_slice %130 {offsets = [0, 32], sizes = [2, 32], strides = [1, 1]} : vector<2x128xf32> to vector<2x32xf32>
    %134 = vector.extract_strided_slice %131 {offsets = [0, 64], sizes = [2, 32], strides = [1, 1]} : vector<2x128xf32> to vector<2x32xf32>
    %135 = vector.extract_strided_slice %130 {offsets = [0, 96], sizes = [2, 32], strides = [1, 1]} : vector<2x128xf32> to vector<2x32xf32>
    %136 = arith.mulf %133, %119 : vector<2x32xf32>
    %137 = arith.mulf %132, %134 : vector<2x32xf32>
    %138 = arith.addf %136, %137 : vector<2x32xf32>
    %139 = math.tanh %138 : vector<2x32xf32>
    %140 = arith.mulf %135, %139 : vector<2x32xf32>
    %c12 = arith.constant 12 : index
    %c0_30 = arith.constant 0 : index
    %141 = vector.load %arg8[%c12, %c0_30] : memref<16x32xf32, #tpu.memory_space<vmem>>, vector<2x32xf32>
    tpu.vector_store %arg8[%c12, %c0_30], %140 {strides = array<i32>} : memref<16x32xf32, #tpu.memory_space<vmem>>, vector<2x32xf32>,
    %142 = vector.extract_strided_slice %5 {offsets = [14, 0], sizes = [2, 128], strides = [1, 1]} : vector<16x128xf32> to vector<2x128xf32>
    %cst_31 = arith.constant dense<0.000000e+00> : vector<2x128xf32>
    %143 = tpu.matmul %140, %6, %cst_31 {dimension_numbers = #tpu.dot_dimension_numbers<[1], [0], [0], [1], [0, 0, 1, 1], [], []>} : vector<2x32xf32>, vector<32x128xf32>, vector<2x128xf32> -> vector<2x128xf32>
    %144 = arith.addf %142, %143 : vector<2x128xf32>
    %145 = arith.negf %144 : vector<2x128xf32>
    %146 = math.exp %145 : vector<2x128xf32>
    %cst_32 = arith.constant 1.000000e+00 : f32
    %147 = vector.broadcast %cst_32 : f32 to vector<2x128xf32>
    %148 = arith.addf %147, %146 : vector<2x128xf32>
    %149 = arith.divf %147, %148 : vector<2x128xf32>
    %150 = math.tanh %144 : vector<2x128xf32>
    %151 = vector.extract_strided_slice %149 {offsets = [0, 0], sizes = [2, 32], strides = [1, 1]} : vector<2x128xf32> to vector<2x32xf32>
    %152 = vector.extract_strided_slice %149 {offsets = [0, 32], sizes = [2, 32], strides = [1, 1]} : vector<2x128xf32> to vector<2x32xf32>
    %153 = vector.extract_strided_slice %150 {offsets = [0, 64], sizes = [2, 32], strides = [1, 1]} : vector<2x128xf32> to vector<2x32xf32>
    %154 = vector.extract_strided_slice %149 {offsets = [0, 96], sizes = [2, 32], strides = [1, 1]} : vector<2x128xf32> to vector<2x32xf32>
    %155 = arith.mulf %152, %138 : vector<2x32xf32>
    %156 = arith.mulf %151, %153 : vector<2x32xf32>
    %157 = arith.addf %155, %156 : vector<2x32xf32>
    %158 = math.tanh %157 : vector<2x32xf32>
    %159 = arith.mulf %154, %158 : vector<2x32xf32>
    %c14 = arith.constant 14 : index
    %c0_33 = arith.constant 0 : index
    %160 = vector.load %arg8[%c14, %c0_33] : memref<16x32xf32, #tpu.memory_space<vmem>>, vector<2x32xf32>
    tpu.vector_store %arg8[%c14, %c0_33], %159 {strides = array<i32>} : memref<16x32xf32, #tpu.memory_space<vmem>>, vector<2x32xf32>,
    %c0_34 = arith.constant 0 : index
    %c0_35 = arith.constant 0 : index
    %161 = vector.load %arg8[%c0_34, %c0_35] : memref<16x32xf32, #tpu.memory_space<vmem>>, vector<16x32xf32>
    %c0_36 = arith.constant 0 : index
    %c0_37 = arith.constant 0 : index
    %162 = vector.load %arg5[%c0_36, %c0_37] : memref<32x1xf32, #tpu.memory_space<vmem>>, vector<32x1xf32>
    %cst_38 = arith.constant dense<0.000000e+00> : vector<16x1xf32>
    %163 = tpu.matmul %161, %162, %cst_38 {dimension_numbers = #tpu.dot_dimension_numbers<[1], [0], [0], [1], [0, 0, 1, 1], [], []>} : vector<16x32xf32>, vector<32x1xf32>, vector<16x1xf32> -> vector<16x1xf32>
    %c0_39 = arith.constant 0 : index
    %c0_40 = arith.constant 0 : index
    %164 = vector.load %arg6[%c0_39, %c0_40] : memref<1x1xf32, #tpu.memory_space<vmem>>, vector<1x1xf32>
    %165 = vector.broadcast %164 : vector<1x1xf32> to vector<16x1xf32>
    %166 = arith.addf %163, %165 : vector<16x1xf32>
    %c0_41 = arith.constant 0 : index
    %c0_42 = arith.constant 0 : index
    %167 = vector.load %arg7[%c0_41, %c0_42] : memref<16x1xf32, #tpu.memory_space<vmem>>, vector<16x1xf32>
    tpu.vector_store %arg7[%c0_41, %c0_42], %166 {strides = array<i32>} : memref<16x1xf32, #tpu.memory_space<vmem>>, vector<16x1xf32>,
    return
  }
  func.func @transform_0(%arg0: i32) -> (i32, i32) {
    %c0_i32 = arith.constant 0 : i32
    %c0_i32_0 = arith.constant 0 : i32
    %c0_i32_1 = arith.constant 0 : i32
    return %c0_i32, %c0_i32_0 : i32, i32
  }
  func.func @transform_1(%arg0: i32) -> (i32, i32) {
    %c0_i32 = arith.constant 0 : i32
    %c0_i32_0 = arith.constant 0 : i32
    %c0_i32_1 = arith.constant 0 : i32
    return %c0_i32, %c0_i32_0 : i32, i32
  }
  func.func @transform_2(%arg0: i32) -> (i32, i32) {
    %c0_i32 = arith.constant 0 : i32
    %c0_i32_0 = arith.constant 0 : i32
    %c0_i32_1 = arith.constant 0 : i32
    return %c0_i32, %c0_i32_0 : i32, i32
  }
  func.func @transform_3(%arg0: i32) -> (i32, i32) {
    %c0_i32 = arith.constant 0 : i32
    %c0_i32_0 = arith.constant 0 : i32
    %c0_i32_1 = arith.constant 0 : i32
    return %c0_i32, %c0_i32_0 : i32, i32
  }
  func.func @transform_4(%arg0: i32) -> (i32, i32) {
    %c0_i32 = arith.constant 0 : i32
    %c0_i32_0 = arith.constant 0 : i32
    %c0_i32_1 = arith.constant 0 : i32
    return %c0_i32, %c0_i32_0 : i32, i32
  }
  func.func @transform_5(%arg0: i32) -> (i32, i32) {
    %c0_i32 = arith.constant 0 : i32
    %c0_i32_0 = arith.constant 0 : i32
    %c0_i32_1 = arith.constant 0 : i32
    return %c0_i32, %c0_i32_0 : i32, i32
  }
  func.func @transform_6(%arg0: i32) -> (i32, i32) {
    %c0_i32 = arith.constant 0 : i32
    %c0_i32_0 = arith.constant 0 : i32
    %c0_i32_1 = arith.constant 0 : i32
    return %c0_i32, %c0_i32_0 : i32, i32
  }
}

</mosaic_0001>

<llo_original>
// kernel: tpu_custom_call.1
$region0: #{tpu_custom_call.1}
  #allocation0 [shape = 'u32[]', space=smem, size = 0x4, offset = 0x4, fixed_abs, tag = 'smem constant byte address 0x4 - core index']
  #allocation1 [shape = 'u32[144,128]{1,0:T(1,128)}', space=vmem, size = 0x12000, scoped, tag = 'internal scratch']
  #allocation2 [shape = 'f32[16,32]{1,0:T(8,128)}', space=vmem, size = 0x2000, scoped, tag = 'scratch operand']
  #allocation3 [shape = 'f32[1,1]{1,0:T(1,128)S(1)}', space=vmem, size = 0x200, scoped, tag = 'scoped memory for tpu_custom_call.1']
  %s0 = inlined_call_operand.vmem [shape: f32[16,1], index: 0, kind: input, shape index: {}]
  %s1 = inlined_call_operand.vmem [shape: f32[1,128], index: 1, kind: input, shape index: {}]
  %s2 = inlined_call_operand.vmem [shape: f32[32,128], index: 2, kind: input, shape index: {}]
  %s3 = inlined_call_operand.vmem [shape: f32[1,128], index: 3, kind: input, shape index: {}]
  %s4 = inlined_call_operand.vmem [shape: f32[32,1], index: 4, kind: input, shape index: {}]
  %s5 = inlined_call_operand.<no memory space> [shape: f32[1,1], index: 5, kind: input, shape index: {}]
  %s6 = inlined_call_operand.vmem [shape: f32[16,1], index: 6, kind: output, shape index: {}]
  %s7 = sld [smem:[#allocation0]]
  $region34: #{tpu_custom_call.1} parent=0
    _
  %s9 = ssub.s32 1, %s7
  %s10 = scalar_select 0, %s9, %s7
  %v11 = vstv %s5
  %12 = vst [vmem:[#allocation3] sm:$0x1] %v11
  // Predicated region
  $region2: #{tpu_custom_call.1} parent=0 // pred_check
    _
  $region3: #{tpu_custom_call.1} parent=0 // pred_check_branch
    %14 = sbr.rel (0) target = $region5
  $region4: #{tpu_custom_call.1} parent=0 // pred_region
    _
  $region5: #{tpu_custom_call.1} parent=0 // pred_fallthru
    _
  // Predicated region
  $region6: #{tpu_custom_call.1} parent=0 // pred_check
    _
  $region7: #{tpu_custom_call.1} parent=0 // pred_check_branch
    %16 = sbr.rel (0) target = $region9
  $region8: #{tpu_custom_call.1} parent=0 // pred_region
    _
  $region9: #{tpu_custom_call.1} parent=0 // pred_fallthru
    _
  // Predicated region
  $region10: #{tpu_custom_call.1} parent=0 // pred_check
    _
  $region11: #{tpu_custom_call.1} parent=0 // pred_check_branch
    %18 = sbr.rel (0) target = $region13
  $region12: #{tpu_custom_call.1} parent=0 // pred_region
    _
  $region13: #{tpu_custom_call.1} parent=0 // pred_fallthru
    _
  // Predicated region
  $region14: #{tpu_custom_call.1} parent=0 // pred_check
    _
  $region15: #{tpu_custom_call.1} parent=0 // pred_check_branch
    %20 = sbr.rel (0) target = $region17
  $region16: #{tpu_custom_call.1} parent=0 // pred_region
    _
  $region17: #{tpu_custom_call.1} parent=0 // pred_fallthru
    _
  // Predicated region
  $region18: #{tpu_custom_call.1} parent=0 // pred_check
    _
  $region19: #{tpu_custom_call.1} parent=0 // pred_check_branch
    %22 = sbr.rel (0) target = $region21
  $region20: #{tpu_custom_call.1} parent=0 // pred_region
    _
  $region21: #{tpu_custom_call.1} parent=0 // pred_fallthru
    _
  // Predicated region
  $region22: #{tpu_custom_call.1} parent=0 // pred_check
    _
  $region23: #{tpu_custom_call.1} parent=0 // pred_check_branch
    %24 = sbr.rel (0) target = $region25
  $region24: #{tpu_custom_call.1} parent=0 // pred_region
    _
  $region25: #{tpu_custom_call.1} parent=0 // pred_fallthru
    _
  %v25 = vld [vmem:[%s0] sm:$0xff]
  %v26 = vld [vmem:[%s0 + $0x8] sm:$0xff]
  %v27 = vld [vmem:[%s1] sm:$0x1]
  %v28 = vld [vmem:[%s3] sm:$0x1]
  %v30 = vlaneseq
  %v31 = vshrl.u32 %v30, 7
  %v32 = vsub.s32 0, %v31
  %v33 = vrot.slane %v28, %v32
  %vm35 = vcmask 7168
  %v37 = vsel %vm35, %v25, 0
  %v40 = vsel %vm35, %v26, 0
  %vm42 = vcmask 1040384
  %v44 = vsel %vm42, %v27, 0
  %46 = vmatprep.subr.mxu0 0.0
  %47 = vmatpush1.msra.mxu0 %v44
  %48 = vmatprep.subr.mxu0 0.0
  %49 = vmatpush1.msra.mxu0 0.0
  %50 = vmatprep.subr.mxu0 0.0
  %51 = vmatpush1.msra.mxu0 0.0
  %52 = vmatprep.subr.mxu0 0.0
  %53 = vmatpush1.msra.mxu0 0.0
  %54 = vmatprep.subr.mxu0 0.0
  %55 = vmatpush1.msra.mxu0 0.0
  %56 = vmatprep.subr.mxu0 0.0
  %57 = vmatpush1.msra.mxu0 0.0
  %58 = vmatprep.subr.mxu0 0.0
  %59 = vmatpush1.msra.mxu0 0.0
  %60 = vmatprep.subr.mxu0 0.0
  %61 = vmatpush1.msra.mxu0 0.0
  %62 = vmatprep.subr.mxu0 0.0
  %63 = vmatpush1.msra.mxu0 0.0
  %64 = vmatprep.subr.mxu0 0.0
  %65 = vmatpush1.msra.mxu0 0.0
  %66 = vmatprep.subr.mxu0 0.0
  %67 = vmatpush1.msra.mxu0 0.0
  %68 = vmatprep.subr.mxu0 0.0
  %69 = vmatpush1.msra.mxu0 0.0
  %70 = vmatprep.subr.mxu0 0.0
  %71 = vmatpush1.msra.mxu0 0.0
  %72 = vmatprep.subr.mxu0 0.0
  %73 = vmatpush1.msra.mxu0 0.0
  %74 = vmatprep.subr.mxu0 0.0
  %75 = vmatpush1.msra.mxu0 0.0
  %76 = vmatprep.subr.mxu0 0.0
  %77 = vmatpush1.msra.mxu0 0.0
  %78 = vmatprep.subr.mxu0 0.0
  %79 = vmatpush1.msra.mxu0 0.0
  %80 = vmatprep.subr.mxu0 0.0
  %81 = vmatpush1.msra.mxu0 0.0
  %82 = vmatprep.subr.mxu0 0.0
  %83 = vmatpush1.msra.mxu0 0.0
  %84 = vmatprep.subr.mxu0 0.0
  %85 = vmatpush1.msra.mxu0 0.0
  %86 = vmatprep.subr.mxu0 0.0
  %87 = vmatpush1.msra.mxu0 0.0
  %88 = vmatprep.subr.mxu0 0.0
  %89 = vmatpush1.msra.mxu0 0.0
  %90 = vmatprep.subr.mxu0 0.0
  %91 = vmatpush1.msra.mxu0 0.0
  %92 = vmatprep.subr.mxu0 0.0
  %93 = vmatpush1.msra.mxu0 0.0
  %94 = vmatprep.subr.mxu0 0.0
  %95 = vmatpush1.msra.mxu0 0.0
  %96 = vmatprep.subr.mxu0 0.0
  %97 = vmatpush1.msra.mxu0 0.0
  %98 = vmatprep.subr.mxu0 0.0
  %99 = vmatpush1.msra.mxu0 0.0
  %100 = vmatprep.subr.mxu0 0.0
  %101 = vmatpush1.msra.mxu0 0.0
  %102 = vmatprep.subr.mxu0 0.0
  %103 = vmatpush1.msra.mxu0 0.0
  %104 = vmatprep.subr.mxu0 0.0
  %105 = vmatpush1.msra.mxu0 0.0
  %106 = vmatprep.subr.mxu0 0.0
  %107 = vmatpush1.msra.mxu0 0.0
  %108 = vmatprep.subr.mxu0 0.0
  %109 = vmatpush1.msra.mxu0 0.0
  %110 = vmatprep.mubr.f32.mxu0 0.0
  %111 = vmatmul.mubr.f32.gmra.mrb[0].mxu0 %v37
  %v112 = vpop.f32.mrb[0].mxu0
  %v113 = vadd.f32 %v33, %v112
  %v114 = vpop.f32.mrb[0].mxu0
  %115 = vmatprep.mubr.f32.mxu0 0.0
  %116 = vmatmul.mubr.f32.gmra.mrb[0].mxu0 %v40
  %v117 = vpop.f32.mrb[0].mxu0
  %v118 = vadd.f32 %v33, %v117
  %v119 = vpop.f32.mrb[0].mxu0
  %120 = vdwg.mxu0
  %v121 = vld [vmem:[%s2] sm:$0xff]
  %v122 = vld [vmem:[%s2 + $0x8] sm:$0xff]
  %v123 = vld [vmem:[%s2 + $0x10] sm:$0xff]
  %v124 = vld [vmem:[%s2 + $0x18] sm:$0xff]
  %vm125 = vcmask 261120
  %v127 = vsel %vm125, 0.0, 0
  %129 = vmatprep.subr.mxu0 0.0
  %130 = vmatpush1.msra.mxu0 %v121
  %131 = vmatprep.subr.mxu0 0.0
  %132 = vmatpush1.msra.mxu0 %v122
  %133 = vmatprep.subr.mxu0 0.0
  %134 = vmatpush1.msra.mxu0 %v123
  %135 = vmatprep.subr.mxu0 0.0
  %136 = vmatpush1.msra.mxu0 %v124
  %137 = vmatprep.subr.mxu0 0.0
  %138 = vmatpush1.msra.mxu0 0.0
  %139 = vmatprep.subr.mxu0 0.0
  %140 = vmatpush1.msra.mxu0 0.0
  %141 = vmatprep.subr.mxu0 0.0
  %142 = vmatpush1.msra.mxu0 0.0
  %143 = vmatprep.subr.mxu0 0.0
  %144 = vmatpush1.msra.mxu0 0.0
  %145 = vmatprep.subr.mxu0 0.0
  %146 = vmatpush1.msra.mxu0 0.0
  %147 = vmatprep.subr.mxu0 0.0
  %148 = vmatpush1.msra.mxu0 0.0
  %149 = vmatprep.subr.mxu0 0.0
  %150 = vmatpush1.msra.mxu0 0.0
  %151 = vmatprep.subr.mxu0 0.0
  %152 = vmatpush1.msra.mxu0 0.0
  %153 = vmatprep.subr.mxu0 0.0
  %154 = vmatpush1.msra.mxu0 0.0
  %155 = vmatprep.subr.mxu0 0.0
  %156 = vmatpush1.msra.mxu0 0.0
  %157 = vmatprep.subr.mxu0 0.0
  %158 = vmatpush1.msra.mxu0 0.0
  %159 = vmatprep.subr.mxu0 0.0
  %160 = vmatpush1.msra.mxu0 0.0
  %161 = vmatprep.subr.mxu0 0.0
  %162 = vmatpush1.msra.mxu0 0.0
  %163 = vmatprep.subr.mxu0 0.0
  %164 = vmatpush1.msra.mxu0 0.0
  %165 = vmatprep.subr.mxu0 0.0
  %166 = vmatpush1.msra.mxu0 0.0
  %167 = vmatprep.subr.mxu0 0.0
  %168 = vmatpush1.msra.mxu0 0.0
  %169 = vmatprep.subr.mxu0 0.0
  %170 = vmatpush1.msra.mxu0 0.0
  %171 = vmatprep.subr.mxu0 0.0
  %172 = vmatpush1.msra.mxu0 0.0
  %173 = vmatprep.subr.mxu0 0.0
  %174 = vmatpush1.msra.mxu0 0.0
  %175 = vmatprep.subr.mxu0 0.0
  %176 = vmatpush1.msra.mxu0 0.0
  %177 = vmatprep.subr.mxu0 0.0
  %178 = vmatpush1.msra.mxu0 0.0
  %179 = vmatprep.subr.mxu0 0.0
  %180 = vmatpush1.msra.mxu0 0.0
  %181 = vmatprep.subr.mxu0 0.0
  %182 = vmatpush1.msra.mxu0 0.0
  %183 = vmatprep.subr.mxu0 0.0
  %184 = vmatpush1.msra.mxu0 0.0
  %185 = vmatprep.subr.mxu0 0.0
  %186 = vmatpush1.msra.mxu0 0.0
  %187 = vmatprep.subr.mxu0 0.0
  %188 = vmatpush1.msra.mxu0 0.0
  %189 = vmatprep.subr.mxu0 0.0
  %190 = vmatpush1.msra.mxu0 0.0
  %191 = vmatprep.subr.mxu0 0.0
  %192 = vmatpush1.msra.mxu0 0.0
  %193 = vmatprep.mubr.f32.mxu0 0.0
  %194 = vmatmul.mubr.f32.gmra.mrb[0].mxu0 %v127
  %v195 = vpop.f32.mrb[0].mxu0
  %v196 = vadd.f32 0.0, %v195
  %v197 = vpop.f32.mrb[0].mxu0
  %198 = vdwg.mxu0
  %v199 = vadd.f32 %v113, %v196
  %v200 = vxor.u32 %v199, 2147483648
  %v201 = vmul.f32 %v200, 1.442695
  %v202 = vpow.pop %v201
  %v203 = vadd.f32 %v202, 1.0
  %v204 = vrcp.pop %v203
  %v205 = vmul.f32 1.0, %v204
  %v206 = vtanh.pop %v199
  %v207 = vmul.f32 %v205, 0.0
  %209 = vrot.lane.b32.xlu0 %v206, 64
  %v210 = vpop.permute.xlu0 %209
  %v212 = vmul.f32 %v205, %v210
  %214 = vrot.lane.b32.xlu0 %v212, 32
  %v215 = vpop.permute.xlu0 %214
  %v217 = vadd.f32 %v207, %v215
  %v218 = vtanh.pop %v217
  %220 = vrot.lane.b32.xlu0 %v218, 64
  %v221 = vpop.permute.xlu0 %220
  %v223 = vmul.f32 %v205, %v221
  %225 = vrot.lane.b32.xlu0 %v223, 32
  %v226 = vpop.permute.xlu0 %225
  %vm228 = vcmask 254976
  %229 = vst.msk [vmem:[#allocation2] sm:$0x3] %vm228, %v226
  %v230 = vsel %vm125, %v226, 0
  %232 = vmatprep.subr.mxu0 0.0
  %233 = vmatpush1.msra.mxu0 %v121
  %234 = vmatprep.subr.mxu0 0.0
  %235 = vmatpush1.msra.mxu0 %v122
  %236 = vmatprep.subr.mxu0 0.0
  %237 = vmatpush1.msra.mxu0 %v123
  %238 = vmatprep.subr.mxu0 0.0
  %239 = vmatpush1.msra.mxu0 %v124
  %240 = vmatprep.subr.mxu0 0.0
  %241 = vmatpush1.msra.mxu0 0.0
  %242 = vmatprep.subr.mxu0 0.0
  %243 = vmatpush1.msra.mxu0 0.0
  %244 = vmatprep.subr.mxu0 0.0
  %245 = vmatpush1.msra.mxu0 0.0
  %246 = vmatprep.subr.mxu0 0.0
  %247 = vmatpush1.msra.mxu0 0.0
  %248 = vmatprep.subr.mxu0 0.0
  %249 = vmatpush1.msra.mxu0 0.0
  %250 = vmatprep.subr.mxu0 0.0
  %251 = vmatpush1.msra.mxu0 0.0
  %252 = vmatprep.subr.mxu0 0.0
  %253 = vmatpush1.msra.mxu0 0.0
  %254 = vmatprep.subr.mxu0 0.0
  %255 = vmatpush1.msra.mxu0 0.0
  %256 = vmatprep.subr.mxu0 0.0
  %257 = vmatpush1.msra.mxu0 0.0
  %258 = vmatprep.subr.mxu0 0.0
  %259 = vmatpush1.msra.mxu0 0.0
  %260 = vmatprep.subr.mxu0 0.0
  %261 = vmatpush1.msra.mxu0 0.0
  %262 = vmatprep.subr.mxu0 0.0
  %263 = vmatpush1.msra.mxu0 0.0
  %264 = vmatprep.subr.mxu0 0.0
  %265 = vmatpush1.msra.mxu0 0.0
  %266 = vmatprep.subr.mxu0 0.0
  %267 = vmatpush1.msra.mxu0 0.0
  %268 = vmatprep.subr.mxu0 0.0
  %269 = vmatpush1.msra.mxu0 0.0
  %270 = vmatprep.subr.mxu0 0.0
  %271 = vmatpush1.msra.mxu0 0.0
  %272 = vmatprep.subr.mxu0 0.0
  %273 = vmatpush1.msra.mxu0 0.0
  %274 = vmatprep.subr.mxu0 0.0
  %275 = vmatpush1.msra.mxu0 0.0
  %276 = vmatprep.subr.mxu0 0.0
  %277 = vmatpush1.msra.mxu0 0.0
  %278 = vmatprep.subr.mxu0 0.0
  %279 = vmatpush1.msra.mxu0 0.0
  %280 = vmatprep.subr.mxu0 0.0
  %281 = vmatpush1.msra.mxu0 0.0
  %282 = vmatprep.subr.mxu0 0.0
  %283 = vmatpush1.msra.mxu0 0.0
  %284 = vmatprep.subr.mxu0 0.0
  %285 = vmatpush1.msra.mxu0 0.0
  %286 = vmatprep.subr.mxu0 0.0
  %287 = vmatpush1.msra.mxu0 0.0
  %288 = vmatprep.subr.mxu0 0.0
  %289 = vmatpush1.msra.mxu0 0.0
  %290 = vmatprep.subr.mxu0 0.0
  %291 = vmatpush1.msra.mxu0 0.0
  %292 = vmatprep.subr.mxu0 0.0
  %293 = vmatpush1.msra.mxu0 0.0
  %294 = vmatprep.subr.mxu0 0.0
  %295 = vmatpush1.msra.mxu0 0.0
  %296 = vmatprep.mubr.f32.mxu0 0.0
  %297 = vmatmul.mubr.f32.gmra.mrb[0].mxu0 %v230
  %v298 = vpop.f32.mrb[0].mxu0
  %v299 = vadd.f32 0.0, %v298
  %v300 = vpop.f32.mrb[0].mxu0
  %301 = vdwg.mxu0
  %v303 = vrot.slane %v299, 6
  %v305 = vadd.f32 %v113, %v303
  %v306 = vxor.u32 %v305, 2147483648
  %v307 = vmul.f32 %v306, 1.442695
  %v308 = vpow.pop %v307
  %v309 = vadd.f32 %v308, 1.0
  %v310 = vrcp.pop %v309
  %v311 = vmul.f32 1.0, %v310
  %v312 = vtanh.pop %v305
  %v314 = vrot.slane %v217, 6
  %v316 = vmul.f32 %v311, %v314
  %318 = vrot.lane.b32.xlu0 %v312, 64
  %v319 = vpop.permute.xlu0 %318
  %v321 = vmul.f32 %v311, %v319
  %323 = vrot.lane.b32.xlu0 %v321, 32
  %v324 = vpop.permute.xlu0 %323
  %v326 = vadd.f32 %v316, %v324
  %v327 = vtanh.pop %v326
  %329 = vrot.lane.b32.xlu0 %v327, 64
  %v330 = vpop.permute.xlu0 %329
  %v332 = vmul.f32 %v311, %v330
  %334 = vrot.lane.b32.xlu0 %v332, 32
  %v335 = vpop.permute.xlu0 %334
  %vm337 = vcmask 257026
  %338 = vst.msk [vmem:[#allocation2] sm:$0xc] %vm337, %v335
  %v339 = vrot.slane %v332, 2
  %340 = vrot.lane.b32.xlu0 %v339, 32
  %v341 = vpop.permute.xlu0 %340
  %v342 = vsel %vm125, %v341, 0
  %344 = vmatprep.subr.mxu0 0.0
  %345 = vmatpush1.msra.mxu0 %v121
  %346 = vmatprep.subr.mxu0 0.0
  %347 = vmatpush1.msra.mxu0 %v122
  %348 = vmatprep.subr.mxu0 0.0
  %349 = vmatpush1.msra.mxu0 %v123
  %350 = vmatprep.subr.mxu0 0.0
  %351 = vmatpush1.msra.mxu0 %v124
  %352 = vmatprep.subr.mxu0 0.0
  %353 = vmatpush1.msra.mxu0 0.0
  %354 = vmatprep.subr.mxu0 0.0
  %355 = vmatpush1.msra.mxu0 0.0
  %356 = vmatprep.subr.mxu0 0.0
  %357 = vmatpush1.msra.mxu0 0.0
  %358 = vmatprep.subr.mxu0 0.0
  %359 = vmatpush1.msra.mxu0 0.0
  %360 = vmatprep.subr.mxu0 0.0
  %361 = vmatpush1.msra.mxu0 0.0
  %362 = vmatprep.subr.mxu0 0.0
  %363 = vmatpush1.msra.mxu0 0.0
  %364 = vmatprep.subr.mxu0 0.0
  %365 = vmatpush1.msra.mxu0 0.0
  %366 = vmatprep.subr.mxu0 0.0
  %367 = vmatpush1.msra.mxu0 0.0
  %368 = vmatprep.subr.mxu0 0.0
  %369 = vmatpush1.msra.mxu0 0.0
  %370 = vmatprep.subr.mxu0 0.0
  %371 = vmatpush1.msra.mxu0 0.0
  %372 = vmatprep.subr.mxu0 0.0
  %373 = vmatpush1.msra.mxu0 0.0
  %374 = vmatprep.subr.mxu0 0.0
  %375 = vmatpush1.msra.mxu0 0.0
  %376 = vmatprep.subr.mxu0 0.0
  %377 = vmatpush1.msra.mxu0 0.0
  %378 = vmatprep.subr.mxu0 0.0
  %379 = vmatpush1.msra.mxu0 0.0
  %380 = vmatprep.subr.mxu0 0.0
  %381 = vmatpush1.msra.mxu0 0.0
  %382 = vmatprep.subr.mxu0 0.0
  %383 = vmatpush1.msra.mxu0 0.0
  %384 = vmatprep.subr.mxu0 0.0
  %385 = vmatpush1.msra.mxu0 0.0
  %386 = vmatprep.subr.mxu0 0.0
  %387 = vmatpush1.msra.mxu0 0.0
  %388 = vmatprep.subr.mxu0 0.0
  %389 = vmatpush1.msra.mxu0 0.0
  %390 = vmatprep.subr.mxu0 0.0
  %391 = vmatpush1.msra.mxu0 0.0
  %392 = vmatprep.subr.mxu0 0.0
  %393 = vmatpush1.msra.mxu0 0.0
  %394 = vmatprep.subr.mxu0 0.0
  %395 = vmatpush1.msra.mxu0 0.0
  %396 = vmatprep.subr.mxu0 0.0
  %397 = vmatpush1.msra.mxu0 0.0
  %398 = vmatprep.subr.mxu0 0.0
  %399 = vmatpush1.msra.mxu0 0.0
  %400 = vmatprep.subr.mxu0 0.0
  %401 = vmatpush1.msra.mxu0 0.0
  %402 = vmatprep.subr.mxu0 0.0
  %403 = vmatpush1.msra.mxu0 0.0
  %404 = vmatprep.subr.mxu0 0.0
  %405 = vmatpush1.msra.mxu0 0.0
  %406 = vmatprep.subr.mxu0 0.0
  %407 = vmatpush1.msra.mxu0 0.0
  %408 = vmatprep.mubr.f32.mxu0 0.0
  %409 = vmatmul.mubr.f32.gmra.mrb[0].mxu0 %v342
  %v410 = vpop.f32.mrb[0].mxu0
  %v411 = vadd.f32 0.0, %v410
  %v412 = vpop.f32.mrb[0].mxu0
  %413 = vdwg.mxu0
  %v415 = vrot.slane %v411, 4
  %v417 = vadd.f32 %v113, %v415
  %v418 = vxor.u32 %v417, 2147483648
  %v419 = vmul.f32 %v418, 1.442695
  %v420 = vpow.pop %v419
  %v421 = vadd.f32 %v420, 1.0
  %v422 = vrcp.pop %v421
  %v423 = vmul.f32 1.0, %v422
  %v424 = vtanh.pop %v417
  %v426 = vrot.slane %v326, 6
  %v428 = vmul.f32 %v423, %v426
  %430 = vrot.lane.b32.xlu0 %v424, 64
  %v431 = vpop.permute.xlu0 %430
  %v433 = vmul.f32 %v423, %v431
  %435 = vrot.lane.b32.xlu0 %v433, 32
  %v436 = vpop.permute.xlu0 %435
  %v438 = vadd.f32 %v428, %v436
  %v439 = vtanh.pop %v438
  %441 = vrot.lane.b32.xlu0 %v439, 64
  %v442 = vpop.permute.xlu0 %441
  %v444 = vmul.f32 %v423, %v442
  %446 = vrot.lane.b32.xlu0 %v444, 32
  %v447 = vpop.permute.xlu0 %446
  %vm449 = vcmask 259076
  %450 = vst.msk [vmem:[#allocation2] sm:$0x30] %vm449, %v447
  %v451 = vrot.slane %v444, 4
  %452 = vrot.lane.b32.xlu0 %v451, 32
  %v453 = vpop.permute.xlu0 %452
  %v454 = vsel %vm125, %v453, 0
  %456 = vmatprep.subr.mxu0 0.0
  %457 = vmatpush1.msra.mxu0 %v121
  %458 = vmatprep.subr.mxu0 0.0
  %459 = vmatpush1.msra.mxu0 %v122
  %460 = vmatprep.subr.mxu0 0.0
  %461 = vmatpush1.msra.mxu0 %v123
  %462 = vmatprep.subr.mxu0 0.0
  %463 = vmatpush1.msra.mxu0 %v124
  %464 = vmatprep.subr.mxu0 0.0
  %465 = vmatpush1.msra.mxu0 0.0
  %466 = vmatprep.subr.mxu0 0.0
  %467 = vmatpush1.msra.mxu0 0.0
  %468 = vmatprep.subr.mxu0 0.0
  %469 = vmatpush1.msra.mxu0 0.0
  %470 = vmatprep.subr.mxu0 0.0
  %471 = vmatpush1.msra.mxu0 0.0
  %472 = vmatprep.subr.mxu0 0.0
  %473 = vmatpush1.msra.mxu0 0.0
  %474 = vmatprep.subr.mxu0 0.0
  %475 = vmatpush1.msra.mxu0 0.0
  %476 = vmatprep.subr.mxu0 0.0
  %477 = vmatpush1.msra.mxu0 0.0
  %478 = vmatprep.subr.mxu0 0.0
  %479 = vmatpush1.msra.mxu0 0.0
  %480 = vmatprep.subr.mxu0 0.0
  %481 = vmatpush1.msra.mxu0 0.0
  %482 = vmatprep.subr.mxu0 0.0
  %483 = vmatpush1.msra.mxu0 0.0
  %484 = vmatprep.subr.mxu0 0.0
  %485 = vmatpush1.msra.mxu0 0.0
  %486 = vmatprep.subr.mxu0 0.0
  %487 = vmatpush1.msra.mxu0 0.0
  %488 = vmatprep.subr.mxu0 0.0
  %489 = vmatpush1.msra.mxu0 0.0
  %490 = vmatprep.subr.mxu0 0.0
  %491 = vmatpush1.msra.mxu0 0.0
  %492 = vmatprep.subr.mxu0 0.0
  %493 = vmatpush1.msra.mxu0 0.0
  %494 = vmatprep.subr.mxu0 0.0
  %495 = vmatpush1.msra.mxu0 0.0
  %496 = vmatprep.subr.mxu0 0.0
  %497 = vmatpush1.msra.mxu0 0.0
  %498 = vmatprep.subr.mxu0 0.0
  %499 = vmatpush1.msra.mxu0 0.0
  %500 = vmatprep.subr.mxu0 0.0
  %501 = vmatpush1.msra.mxu0 0.0
  %502 = vmatprep.subr.mxu0 0.0
  %503 = vmatpush1.msra.mxu0 0.0
  %504 = vmatprep.subr.mxu0 0.0
  %505 = vmatpush1.msra.mxu0 0.0
  %506 = vmatprep.subr.mxu0 0.0
  %507 = vmatpush1.msra.mxu0 0.0
  %508 = vmatprep.subr.mxu0 0.0
  %509 = vmatpush1.msra.mxu0 0.0
  %510 = vmatprep.subr.mxu0 0.0
  %511 = vmatpush1.msra.mxu0 0.0
  %512 = vmatprep.subr.mxu0 0.0
  %513 = vmatpush1.msra.mxu0 0.0
  %514 = vmatprep.subr.mxu0 0.0
  %515 = vmatpush1.msra.mxu0 0.0
  %516 = vmatprep.subr.mxu0 0.0
  %517 = vmatpush1.msra.mxu0 0.0
  %518 = vmatprep.subr.mxu0 0.0
  %519 = vmatpush1.msra.mxu0 0.0
  %520 = vmatprep.mubr.f32.mxu0 0.0
  %521 = vmatmul.mubr.f32.gmra.mrb[0].mxu0 %v454
  %v522 = vpop.f32.mrb[0].mxu0
  %v523 = vadd.f32 0.0, %v522
  %v524 = vpop.f32.mrb[0].mxu0
  %525 = vdwg.mxu0
  %v527 = vrot.slane %v523, 2
  %v529 = vadd.f32 %v113, %v527
  %v530 = vxor.u32 %v529, 2147483648
  %v531 = vmul.f32 %v530, 1.442695
  %v532 = vpow.pop %v531
  %v533 = vadd.f32 %v532, 1.0
  %v534 = vrcp.pop %v533
  %v535 = vmul.f32 1.0, %v534
  %v536 = vtanh.pop %v529
  %v538 = vrot.slane %v438, 6
  %v540 = vmul.f32 %v535, %v538
  %542 = vrot.lane.b32.xlu0 %v536, 64
  %v543 = vpop.permute.xlu0 %542
  %v545 = vmul.f32 %v535, %v543
  %547 = vrot.lane.b32.xlu0 %v545, 32
  %v548 = vpop.permute.xlu0 %547
  %v550 = vadd.f32 %v540, %v548
  %v551 = vtanh.pop %v550
  %553 = vrot.lane.b32.xlu0 %v551, 64
  %v554 = vpop.permute.xlu0 %553
  %v556 = vmul.f32 %v535, %v554
  %558 = vrot.lane.b32.xlu0 %v556, 32
  %v559 = vpop.permute.xlu0 %558
  %vm561 = vcmask 261126
  %562 = vst.msk [vmem:[#allocation2] sm:$0xc0] %vm561, %v559
  %v563 = vrot.slane %v556, 6
  %564 = vrot.lane.b32.xlu0 %v563, 32
  %v565 = vpop.permute.xlu0 %564
  %v566 = vsel %vm125, %v565, 0
  %568 = vmatprep.subr.mxu0 0.0
  %569 = vmatpush1.msra.mxu0 %v121
  %570 = vmatprep.subr.mxu0 0.0
  %571 = vmatpush1.msra.mxu0 %v122
  %572 = vmatprep.subr.mxu0 0.0
  %573 = vmatpush1.msra.mxu0 %v123
  %574 = vmatprep.subr.mxu0 0.0
  %575 = vmatpush1.msra.mxu0 %v124
  %576 = vmatprep.subr.mxu0 0.0
  %577 = vmatpush1.msra.mxu0 0.0
  %578 = vmatprep.subr.mxu0 0.0
  %579 = vmatpush1.msra.mxu0 0.0
  %580 = vmatprep.subr.mxu0 0.0
  %581 = vmatpush1.msra.mxu0 0.0
  %582 = vmatprep.subr.mxu0 0.0
  %583 = vmatpush1.msra.mxu0 0.0
  %584 = vmatprep.subr.mxu0 0.0
  %585 = vmatpush1.msra.mxu0 0.0
  %586 = vmatprep.subr.mxu0 0.0
  %587 = vmatpush1.msra.mxu0 0.0
  %588 = vmatprep.subr.mxu0 0.0
  %589 = vmatpush1.msra.mxu0 0.0
  %590 = vmatprep.subr.mxu0 0.0
  %591 = vmatpush1.msra.mxu0 0.0
  %592 = vmatprep.subr.mxu0 0.0
  %593 = vmatpush1.msra.mxu0 0.0
  %594 = vmatprep.subr.mxu0 0.0
  %595 = vmatpush1.msra.mxu0 0.0
  %596 = vmatprep.subr.mxu0 0.0
  %597 = vmatpush1.msra.mxu0 0.0
  %598 = vmatprep.subr.mxu0 0.0
  %599 = vmatpush1.msra.mxu0 0.0
  %600 = vmatprep.subr.mxu0 0.0
  %601 = vmatpush1.msra.mxu0 0.0
  %602 = vmatprep.subr.mxu0 0.0
  %603 = vmatpush1.msra.mxu0 0.0
  %604 = vmatprep.subr.mxu0 0.0
  %605 = vmatpush1.msra.mxu0 0.0
  %606 = vmatprep.subr.mxu0 0.0
  %607 = vmatpush1.msra.mxu0 0.0
  %608 = vmatprep.subr.mxu0 0.0
  %609 = vmatpush1.msra.mxu0 0.0
  %610 = vmatprep.subr.mxu0 0.0
  %611 = vmatpush1.msra.mxu0 0.0
  %612 = vmatprep.subr.mxu0 0.0
  %613 = vmatpush1.msra.mxu0 0.0
  %614 = vmatprep.subr.mxu0 0.0
  %615 = vmatpush1.msra.mxu0 0.0
  %616 = vmatprep.subr.mxu0 0.0
  %617 = vmatpush1.msra.mxu0 0.0
  %618 = vmatprep.subr.mxu0 0.0
  %619 = vmatpush1.msra.mxu0 0.0
  %620 = vmatprep.subr.mxu0 0.0
  %621 = vmatpush1.msra.mxu0 0.0
  %622 = vmatprep.subr.mxu0 0.0
  %623 = vmatpush1.msra.mxu0 0.0
  %624 = vmatprep.subr.mxu0 0.0
  %625 = vmatpush1.msra.mxu0 0.0
  %626 = vmatprep.subr.mxu0 0.0
  %627 = vmatpush1.msra.mxu0 0.0
  %628 = vmatprep.subr.mxu0 0.0
  %629 = vmatpush1.msra.mxu0 0.0
  %630 = vmatprep.subr.mxu0 0.0
  %631 = vmatpush1.msra.mxu0 0.0
  %632 = vmatprep.mubr.f32.mxu0 0.0
  %633 = vmatmul.mubr.f32.gmra.mrb[0].mxu0 %v566
  %v634 = vpop.f32.mrb[0].mxu0
  %v635 = vadd.f32 0.0, %v634
  %v636 = vpop.f32.mrb[0].mxu0
  %637 = vdwg.mxu0
  %v638 = vadd.f32 %v118, %v635
  %v639 = vxor.u32 %v638, 2147483648
  %v640 = vmul.f32 %v639, 1.442695
  %v641 = vpow.pop %v640
  %v642 = vadd.f32 %v641, 1.0
  %v643 = vrcp.pop %v642
  %v644 = vmul.f32 1.0, %v643
  %v645 = vtanh.pop %v638
  %v647 = vrot.slane %v550, 6
  %v649 = vmul.f32 %v644, %v647
  %651 = vrot.lane.b32.xlu0 %v645, 64
  %v652 = vpop.permute.xlu0 %651
  %v654 = vmul.f32 %v644, %v652
  %656 = vrot.lane.b32.xlu0 %v654, 32
  %v657 = vpop.permute.xlu0 %656
  %v659 = vadd.f32 %v649, %v657
  %v660 = vtanh.pop %v659
  %662 = vrot.lane.b32.xlu0 %v660, 64
  %v663 = vpop.permute.xlu0 %662
  %v665 = vmul.f32 %v644, %v663
  %667 = vrot.lane.b32.xlu0 %v665, 32
  %v668 = vpop.permute.xlu0 %667
  %670 = vst.msk [vmem:[#allocation2 + $0x8] sm:$0x3] %vm228, %v668
  %v671 = vsel %vm125, %v668, 0
  %673 = vmatprep.subr.mxu0 0.0
  %674 = vmatpush1.msra.mxu0 %v121
  %675 = vmatprep.subr.mxu0 0.0
  %676 = vmatpush1.msra.mxu0 %v122
  %677 = vmatprep.subr.mxu0 0.0
  %678 = vmatpush1.msra.mxu0 %v123
  %679 = vmatprep.subr.mxu0 0.0
  %680 = vmatpush1.msra.mxu0 %v124
  %681 = vmatprep.subr.mxu0 0.0
  %682 = vmatpush1.msra.mxu0 0.0
  %683 = vmatprep.subr.mxu0 0.0
  %684 = vmatpush1.msra.mxu0 0.0
  %685 = vmatprep.subr.mxu0 0.0
  %686 = vmatpush1.msra.mxu0 0.0
  %687 = vmatprep.subr.mxu0 0.0
  %688 = vmatpush1.msra.mxu0 0.0
  %689 = vmatprep.subr.mxu0 0.0
  %690 = vmatpush1.msra.mxu0 0.0
  %691 = vmatprep.subr.mxu0 0.0
  %692 = vmatpush1.msra.mxu0 0.0
  %693 = vmatprep.subr.mxu0 0.0
  %694 = vmatpush1.msra.mxu0 0.0
  %695 = vmatprep.subr.mxu0 0.0
  %696 = vmatpush1.msra.mxu0 0.0
  %697 = vmatprep.subr.mxu0 0.0
  %698 = vmatpush1.msra.mxu0 0.0
  %699 = vmatprep.subr.mxu0 0.0
  %700 = vmatpush1.msra.mxu0 0.0
  %701 = vmatprep.subr.mxu0 0.0
  %702 = vmatpush1.msra.mxu0 0.0
  %703 = vmatprep.subr.mxu0 0.0
  %704 = vmatpush1.msra.mxu0 0.0
  %705 = vmatprep.subr.mxu0 0.0
  %706 = vmatpush1.msra.mxu0 0.0
  %707 = vmatprep.subr.mxu0 0.0
  %708 = vmatpush1.msra.mxu0 0.0
  %709 = vmatprep.subr.mxu0 0.0
  %710 = vmatpush1.msra.mxu0 0.0
  %711 = vmatprep.subr.mxu0 0.0
  %712 = vmatpush1.msra.mxu0 0.0
  %713 = vmatprep.subr.mxu0 0.0
  %714 = vmatpush1.msra.mxu0 0.0
  %715 = vmatprep.subr.mxu0 0.0
  %716 = vmatpush1.msra.mxu0 0.0
  %717 = vmatprep.subr.mxu0 0.0
  %718 = vmatpush1.msra.mxu0 0.0
  %719 = vmatprep.subr.mxu0 0.0
  %720 = vmatpush1.msra.mxu0 0.0
  %721 = vmatprep.subr.mxu0 0.0
  %722 = vmatpush1.msra.mxu0 0.0
  %723 = vmatprep.subr.mxu0 0.0
  %724 = vmatpush1.msra.mxu0 0.0
  %725 = vmatprep.subr.mxu0 0.0
  %726 = vmatpush1.msra.mxu0 0.0
  %727 = vmatprep.subr.mxu0 0.0
  %728 = vmatpush1.msra.mxu0 0.0
  %729 = vmatprep.subr.mxu0 0.0
  %730 = vmatpush1.msra.mxu0 0.0
  %731 = vmatprep.subr.mxu0 0.0
  %732 = vmatpush1.msra.mxu0 0.0
  %733 = vmatprep.subr.mxu0 0.0
  %734 = vmatpush1.msra.mxu0 0.0
  %735 = vmatprep.subr.mxu0 0.0
  %736 = vmatpush1.msra.mxu0 0.0
  %737 = vmatprep.mubr.f32.mxu0 0.0
  %738 = vmatmul.mubr.f32.gmra.mrb[0].mxu0 %v671
  %v739 = vpop.f32.mrb[0].mxu0
  %v740 = vadd.f32 0.0, %v739
  %v741 = vpop.f32.mrb[0].mxu0
  %742 = vdwg.mxu0
  %v744 = vrot.slane %v740, 6
  %v746 = vadd.f32 %v118, %v744
  %v747 = vxor.u32 %v746, 2147483648
  %v748 = vmul.f32 %v747, 1.442695
  %v749 = vpow.pop %v748
  %v750 = vadd.f32 %v749, 1.0
  %v751 = vrcp.pop %v750
  %v752 = vmul.f32 1.0, %v751
  %v753 = vtanh.pop %v746
  %v755 = vrot.slane %v659, 6
  %v757 = vmul.f32 %v752, %v755
  %759 = vrot.lane.b32.xlu0 %v753, 64
  %v760 = vpop.permute.xlu0 %759
  %v762 = vmul.f32 %v752, %v760
  %764 = vrot.lane.b32.xlu0 %v762, 32
  %v765 = vpop.permute.xlu0 %764
  %v767 = vadd.f32 %v757, %v765
  %v768 = vtanh.pop %v767
  %770 = vrot.lane.b32.xlu0 %v768, 64
  %v771 = vpop.permute.xlu0 %770
  %v773 = vmul.f32 %v752, %v771
  %775 = vrot.lane.b32.xlu0 %v773, 32
  %v776 = vpop.permute.xlu0 %775
  %778 = vst.msk [vmem:[#allocation2 + $0x8] sm:$0xc] %vm337, %v776
  %v779 = vrot.slane %v773, 2
  %780 = vrot.lane.b32.xlu0 %v779, 32
  %v781 = vpop.permute.xlu0 %780
  %v782 = vsel %vm125, %v781, 0
  %784 = vmatprep.subr.mxu0 0.0
  %785 = vmatpush1.msra.mxu0 %v121
  %786 = vmatprep.subr.mxu0 0.0
  %787 = vmatpush1.msra.mxu0 %v122
  %788 = vmatprep.subr.mxu0 0.0
  %789 = vmatpush1.msra.mxu0 %v123
  %790 = vmatprep.subr.mxu0 0.0
  %791 = vmatpush1.msra.mxu0 %v124
  %792 = vmatprep.subr.mxu0 0.0
  %793 = vmatpush1.msra.mxu0 0.0
  %794 = vmatprep.subr.mxu0 0.0
  %795 = vmatpush1.msra.mxu0 0.0
  %796 = vmatprep.subr.mxu0 0.0
  %797 = vmatpush1.msra.mxu0 0.0
  %798 = vmatprep.subr.mxu0 0.0
  %799 = vmatpush1.msra.mxu0 0.0
  %800 = vmatprep.subr.mxu0 0.0
  %801 = vmatpush1.msra.mxu0 0.0
  %802 = vmatprep.subr.mxu0 0.0
  %803 = vmatpush1.msra.mxu0 0.0
  %804 = vmatprep.subr.mxu0 0.0
  %805 = vmatpush1.msra.mxu0 0.0
  %806 = vmatprep.subr.mxu0 0.0
  %807 = vmatpush1.msra.mxu0 0.0
  %808 = vmatprep.subr.mxu0 0.0
  %809 = vmatpush1.msra.mxu0 0.0
  %810 = vmatprep.subr.mxu0 0.0
  %811 = vmatpush1.msra.mxu0 0.0
  %812 = vmatprep.subr.mxu0 0.0
  %813 = vmatpush1.msra.mxu0 0.0
  %814 = vmatprep.subr.mxu0 0.0
  %815 = vmatpush1.msra.mxu0 0.0
  %816 = vmatprep.subr.mxu0 0.0
  %817 = vmatpush1.msra.mxu0 0.0
  %818 = vmatprep.subr.mxu0 0.0
  %819 = vmatpush1.msra.mxu0 0.0
  %820 = vmatprep.subr.mxu0 0.0
  %821 = vmatpush1.msra.mxu0 0.0
  %822 = vmatprep.subr.mxu0 0.0
  %823 = vmatpush1.msra.mxu0 0.0
  %824 = vmatprep.subr.mxu0 0.0
  %825 = vmatpush1.msra.mxu0 0.0
  %826 = vmatprep.subr.mxu0 0.0
  %827 = vmatpush1.msra.mxu0 0.0
  %828 = vmatprep.subr.mxu0 0.0
  %829 = vmatpush1.msra.mxu0 0.0
  %830 = vmatprep.subr.mxu0 0.0
  %831 = vmatpush1.msra.mxu0 0.0
  %832 = vmatprep.subr.mxu0 0.0
  %833 = vmatpush1.msra.mxu0 0.0
  %834 = vmatprep.subr.mxu0 0.0
  %835 = vmatpush1.msra.mxu0 0.0
  %836 = vmatprep.subr.mxu0 0.0
  %837 = vmatpush1.msra.mxu0 0.0
  %838 = vmatprep.subr.mxu0 0.0
  %839 = vmatpush1.msra.mxu0 0.0
  %840 = vmatprep.subr.mxu0 0.0
  %841 = vmatpush1.msra.mxu0 0.0
  %842 = vmatprep.subr.mxu0 0.0
  %843 = vmatpush1.msra.mxu0 0.0
  %844 = vmatprep.subr.mxu0 0.0
  %845 = vmatpush1.msra.mxu0 0.0
  %846 = vmatprep.subr.mxu0 0.0
  %847 = vmatpush1.msra.mxu0 0.0
  %848 = vmatprep.mubr.f32.mxu0 0.0
  %849 = vmatmul.mubr.f32.gmra.mrb[0].mxu0 %v782
  %v850 = vpop.f32.mrb[0].mxu0
  %v851 = vadd.f32 0.0, %v850
  %v852 = vpop.f32.mrb[0].mxu0
  %853 = vdwg.mxu0
  %v855 = vrot.slane %v851, 4
  %v857 = vadd.f32 %v118, %v855
  %v858 = vxor.u32 %v857, 2147483648
  %v859 = vmul.f32 %v858, 1.442695
  %v860 = vpow.pop %v859
  %v861 = vadd.f32 %v860, 1.0
  %v862 = vrcp.pop %v861
  %v863 = vmul.f32 1.0, %v862
  %v864 = vtanh.pop %v857
  %v866 = vrot.slane %v767, 6
  %v868 = vmul.f32 %v863, %v866
  %870 = vrot.lane.b32.xlu0 %v864, 64
  %v871 = vpop.permute.xlu0 %870
  %v873 = vmul.f32 %v863, %v871
  %875 = vrot.lane.b32.xlu0 %v873, 32
  %v876 = vpop.permute.xlu0 %875
  %v878 = vadd.f32 %v868, %v876
  %v879 = vtanh.pop %v878
  %881 = vrot.lane.b32.xlu0 %v879, 64
  %v882 = vpop.permute.xlu0 %881
  %v884 = vmul.f32 %v863, %v882
  %886 = vrot.lane.b32.xlu0 %v884, 32
  %v887 = vpop.permute.xlu0 %886
  %889 = vst.msk [vmem:[#allocation2 + $0x8] sm:$0x30] %vm449, %v887
  %v890 = vrot.slane %v884, 4
  %891 = vrot.lane.b32.xlu0 %v890, 32
  %v892 = vpop.permute.xlu0 %891
  %v893 = vsel %vm125, %v892, 0
  %895 = vmatprep.subr.mxu0 0.0
  %896 = vmatpush1.msra.mxu0 %v121
  %897 = vmatprep.subr.mxu0 0.0
  %898 = vmatpush1.msra.mxu0 %v122
  %899 = vmatprep.subr.mxu0 0.0
  %900 = vmatpush1.msra.mxu0 %v123
  %901 = vmatprep.subr.mxu0 0.0
  %902 = vmatpush1.msra.mxu0 %v124
  %903 = vmatprep.subr.mxu0 0.0
  %904 = vmatpush1.msra.mxu0 0.0
  %905 = vmatprep.subr.mxu0 0.0
  %906 = vmatpush1.msra.mxu0 0.0
  %907 = vmatprep.subr.mxu0 0.0
  %908 = vmatpush1.msra.mxu0 0.0
  %909 = vmatprep.subr.mxu0 0.0
  %910 = vmatpush1.msra.mxu0 0.0
  %911 = vmatprep.subr.mxu0 0.0
  %912 = vmatpush1.msra.mxu0 0.0
  %913 = vmatprep.subr.mxu0 0.0
  %914 = vmatpush1.msra.mxu0 0.0
  %915 = vmatprep.subr.mxu0 0.0
  %916 = vmatpush1.msra.mxu0 0.0
  %917 = vmatprep.subr.mxu0 0.0
  %918 = vmatpush1.msra.mxu0 0.0
  %919 = vmatprep.subr.mxu0 0.0
  %920 = vmatpush1.msra.mxu0 0.0
  %921 = vmatprep.subr.mxu0 0.0
  %922 = vmatpush1.msra.mxu0 0.0
  %923 = vmatprep.subr.mxu0 0.0
  %924 = vmatpush1.msra.mxu0 0.0
  %925 = vmatprep.subr.mxu0 0.0
  %926 = vmatpush1.msra.mxu0 0.0
  %927 = vmatprep.subr.mxu0 0.0
  %928 = vmatpush1.msra.mxu0 0.0
  %929 = vmatprep.subr.mxu0 0.0
  %930 = vmatpush1.msra.mxu0 0.0
  %931 = vmatprep.subr.mxu0 0.0
  %932 = vmatpush1.msra.mxu0 0.0
  %933 = vmatprep.subr.mxu0 0.0
  %934 = vmatpush1.msra.mxu0 0.0
  %935 = vmatprep.subr.mxu0 0.0
  %936 = vmatpush1.msra.mxu0 0.0
  %937 = vmatprep.subr.mxu0 0.0
  %938 = vmatpush1.msra.mxu0 0.0
  %939 = vmatprep.subr.mxu0 0.0
  %940 = vmatpush1.msra.mxu0 0.0
  %941 = vmatprep.subr.mxu0 0.0
  %942 = vmatpush1.msra.mxu0 0.0
  %943 = vmatprep.subr.mxu0 0.0
  %944 = vmatpush1.msra.mxu0 0.0
  %945 = vmatprep.subr.mxu0 0.0
  %946 = vmatpush1.msra.mxu0 0.0
  %947 = vmatprep.subr.mxu0 0.0
  %948 = vmatpush1.msra.mxu0 0.0
  %949 = vmatprep.subr.mxu0 0.0
  %950 = vmatpush1.msra.mxu0 0.0
  %951 = vmatprep.subr.mxu0 0.0
  %952 = vmatpush1.msra.mxu0 0.0
  %953 = vmatprep.subr.mxu0 0.0
  %954 = vmatpush1.msra.mxu0 0.0
  %955 = vmatprep.subr.mxu0 0.0
  %956 = vmatpush1.msra.mxu0 0.0
  %957 = vmatprep.subr.mxu0 0.0
  %958 = vmatpush1.msra.mxu0 0.0
  %959 = vmatprep.mubr.f32.mxu0 0.0
  %960 = vmatmul.mubr.f32.gmra.mrb[0].mxu0 %v893
  %v961 = vpop.f32.mrb[0].mxu0
  %v962 = vadd.f32 0.0, %v961
  %v963 = vpop.f32.mrb[0].mxu0
  %964 = vdwg.mxu0
  %v966 = vrot.slane %v962, 2
  %v968 = vadd.f32 %v118, %v966
  %v969 = vxor.u32 %v968, 2147483648
  %v970 = vmul.f32 %v969, 1.442695
  %v971 = vpow.pop %v970
  %v972 = vadd.f32 %v971, 1.0
  %v973 = vrcp.pop %v972
  %v974 = vmul.f32 1.0, %v973
  %v975 = vtanh.pop %v968
  %v977 = vrot.slane %v878, 6
  %v979 = vmul.f32 %v974, %v977
  %981 = vrot.lane.b32.xlu0 %v975, 64
  %v982 = vpop.permute.xlu0 %981
  %v984 = vmul.f32 %v974, %v982
  %986 = vrot.lane.b32.xlu0 %v984, 32
  %v987 = vpop.permute.xlu0 %986
  %v989 = vadd.f32 %v979, %v987
  %v990 = vtanh.pop %v989
  %992 = vrot.lane.b32.xlu0 %v990, 64
  %v993 = vpop.permute.xlu0 %992
  %v995 = vmul.f32 %v974, %v993
  %997 = vrot.lane.b32.xlu0 %v995, 32
  %v998 = vpop.permute.xlu0 %997
  %1000 = vst.msk [vmem:[#allocation2 + $0x8] sm:$0xc0] %vm561, %v998
  %v1001 = vld [vmem:[#allocation2] sm:$0xff]
  %v1002 = vld [vmem:[#allocation2 + $0x8] sm:$0xff]
  %v1003 = vld [vmem:[%s4] sm:$0xff]
  %v1004 = vld [vmem:[%s4 + $0x8] sm:$0xff]
  %v1005 = vld [vmem:[%s4 + $0x10] sm:$0xff]
  %v1006 = vld [vmem:[%s4 + $0x18] sm:$0xff]
  %v1007 = vld [vmem:[#allocation3] sm:$0x1]
  %v1009 = vlaneseq
  %v1010 = vshrl.u32 %v1009, 7
  %v1011 = vsub.s32 0, %v1010
  %v1012 = vrot.slane %v1007, %v1011
  %v1015 = vsel %vm125, %v1001, 0
  %v1018 = vsel %vm125, %v1002, 0
  %1020 = vmatprep.subr.mxu0 0.0
  %1021 = vmatpush1.msra.mxu0 %v1003
  %1022 = vmatprep.subr.mxu0 0.0
  %1023 = vmatpush1.msra.mxu0 %v1004
  %1024 = vmatprep.subr.mxu0 0.0
  %1025 = vmatpush1.msra.mxu0 %v1005
  %1026 = vmatprep.subr.mxu0 0.0
  %1027 = vmatpush1.msra.mxu0 %v1006
  %1028 = vmatprep.subr.mxu0 0.0
  %1029 = vmatpush1.msra.mxu0 0.0
  %1030 = vmatprep.subr.mxu0 0.0
  %1031 = vmatpush1.msra.mxu0 0.0
  %1032 = vmatprep.subr.mxu0 0.0
  %1033 = vmatpush1.msra.mxu0 0.0
  %1034 = vmatprep.subr.mxu0 0.0
  %1035 = vmatpush1.msra.mxu0 0.0
  %1036 = vmatprep.subr.mxu0 0.0
  %1037 = vmatpush1.msra.mxu0 0.0
  %1038 = vmatprep.subr.mxu0 0.0
  %1039 = vmatpush1.msra.mxu0 0.0
  %1040 = vmatprep.subr.mxu0 0.0
  %1041 = vmatpush1.msra.mxu0 0.0
  %1042 = vmatprep.subr.mxu0 0.0
  %1043 = vmatpush1.msra.mxu0 0.0
  %1044 = vmatprep.subr.mxu0 0.0
  %1045 = vmatpush1.msra.mxu0 0.0
  %1046 = vmatprep.subr.mxu0 0.0
  %1047 = vmatpush1.msra.mxu0 0.0
  %1048 = vmatprep.subr.mxu0 0.0
  %1049 = vmatpush1.msra.mxu0 0.0
  %1050 = vmatprep.subr.mxu0 0.0
  %1051 = vmatpush1.msra.mxu0 0.0
  %1052 = vmatprep.subr.mxu0 0.0
  %1053 = vmatpush1.msra.mxu0 0.0
  %1054 = vmatprep.subr.mxu0 0.0
  %1055 = vmatpush1.msra.mxu0 0.0
  %1056 = vmatprep.subr.mxu0 0.0
  %1057 = vmatpush1.msra.mxu0 0.0
  %1058 = vmatprep.subr.mxu0 0.0
  %1059 = vmatpush1.msra.mxu0 0.0
  %1060 = vmatprep.subr.mxu0 0.0
  %1061 = vmatpush1.msra.mxu0 0.0
  %1062 = vmatprep.subr.mxu0 0.0
  %1063 = vmatpush1.msra.mxu0 0.0
  %1064 = vmatprep.subr.mxu0 0.0
  %1065 = vmatpush1.msra.mxu0 0.0
  %1066 = vmatprep.subr.mxu0 0.0
  %1067 = vmatpush1.msra.mxu0 0.0
  %1068 = vmatprep.subr.mxu0 0.0
  %1069 = vmatpush1.msra.mxu0 0.0
  %1070 = vmatprep.subr.mxu0 0.0
  %1071 = vmatpush1.msra.mxu0 0.0
  %1072 = vmatprep.subr.mxu0 0.0
  %1073 = vmatpush1.msra.mxu0 0.0
  %1074 = vmatprep.subr.mxu0 0.0
  %1075 = vmatpush1.msra.mxu0 0.0
  %1076 = vmatprep.subr.mxu0 0.0
  %1077 = vmatpush1.msra.mxu0 0.0
  %1078 = vmatprep.subr.mxu0 0.0
  %1079 = vmatpush1.msra.mxu0 0.0
  %1080 = vmatprep.subr.mxu0 0.0
  %1081 = vmatpush1.msra.mxu0 0.0
  %1082 = vmatprep.subr.mxu0 0.0
  %1083 = vmatpush1.msra.mxu0 0.0
  %1084 = vmatprep.mubr.f32.mxu0 0.0
  %1085 = vmatmul.mubr.f32.gmra.mrb[0].mxu0 %v1015
  %v1086 = vpop.f32.mrb[0].mxu0
  %v1087 = vadd.f32 %v1012, %v1086
  %v1088 = vpop.f32.mrb[0].mxu0
  %1089 = vmatprep.mubr.f32.mxu0 0.0
  %1090 = vmatmul.mubr.f32.gmra.mrb[0].mxu0 %v1018
  %v1091 = vpop.f32.mrb[0].mxu0
  %v1092 = vadd.f32 %v1012, %v1091
  %v1093 = vpop.f32.mrb[0].mxu0
  %1094 = vdwg.mxu0
  %1095 = vst.msk [vmem:[%s6] sm:$0xff] %vm35, %v1087
  %1096 = vst.msk [vmem:[%s6 + $0x8] sm:$0xff] %vm35, %v1092
  // Predicated region
  $region26: #{tpu_custom_call.1} parent=0 // pred_check
    _
  $region27: #{tpu_custom_call.1} parent=0 // pred_check_branch
    %1098 = sbr.rel (0) target = $region29
  $region28: #{tpu_custom_call.1} parent=0 // pred_region
    _
  $region29: #{tpu_custom_call.1} parent=0 // pred_fallthru
    _
  // Predicated region
  $region30: #{tpu_custom_call.1} parent=0 // pred_check
    _
  $region31: #{tpu_custom_call.1} parent=0 // pred_check_branch
    %1100 = sbr.rel (0) target = $region33
  $region32: #{tpu_custom_call.1} parent=0 // pred_region
    _
  $region33: #{tpu_custom_call.1} parent=0 // pred_fallthru
    _

</llo_original>
